<compile_context>
chip_gen: v6e
topology: v6e:2x2x1
jax: 0.10.0
libtpu: 0.0.40
codegen_flags: <defaults>
</compile_context>

<pallas_src>
import jax
import jax.numpy as jnp
from jax.experimental import pallas as pl
from jax.experimental.pallas import tpu as pltpu


def _round_up(x: int, m: int) -> int:
    return ((x + m - 1) // m) * m


# -----------------------------------------------------------------------------
# Kernels
# -----------------------------------------------------------------------------

def _gcn_single_block_kernel(adj_ref, emb_ref, out_ref):
    # Whole problem resident in VMEM: one MXU matmul, no grid, no accumulator.
    out_ref[...] = jnp.dot(
        adj_ref[...], emb_ref[...], preferred_element_type=jnp.float32
    ).astype(out_ref.dtype)


def _gcn_tiled_single_k_kernel(adj_ref, emb_ref, out_ref):
    # tk == K (single K step): no accumulator scratch, write the dot directly.
    out_ref[...] = jnp.dot(
        adj_ref[...], emb_ref[...], preferred_element_type=jnp.float32
    ).astype(out_ref.dtype)


def _gcn_tiled_acc_kernel(adj_ref, emb_ref, out_ref, acc_ref):
    # Multi-step K reduction: accumulate in f32 VMEM scratch.
    @pl.when(pl.program_id(2) == 0)
    def _():
        acc_ref[...] = jnp.zeros_like(acc_ref)

    acc_ref[...] += jnp.dot(
        adj_ref[...], emb_ref[...], preferred_element_type=jnp.float32
    )

    @pl.when(pl.program_id(2) == pl.num_programs(2) - 1)
    def _():
        out_ref[...] = acc_ref[...].astype(out_ref.dtype)


# -----------------------------------------------------------------------------
# Wrapper
# -----------------------------------------------------------------------------

def gcn_layer(
    adj: jax.Array,
    embeds: jax.Array,
    *,
    tm: int = 256,
    tk: int = 256,
    max_tn: int = 1024,
    single_block_vmem_limit: int = 8 * 1024 * 1024,
) -> jax.Array:
    """out = adj @ embeds (GCN message passing / torch.spmm semantics)."""
    M, K = adj.shape
    K2, D = embeds.shape
    if K != K2:
        raise ValueError(f"adj columns ({K}) must match embeds rows ({K2})")
    out_dtype = embeds.dtype
    itemsize = 4  # f32 compute

    cost = pl.CostEstimate(
        flops=2 * M * K * D,
        transcendentals=0,
        bytes_accessed=itemsize * (M * K + K * D + M * D),
    )

    total_bytes = itemsize * (M * K + K * D + M * D)

    # ---------------- Fast path: single VMEM block, no grid ------------------
    if total_bytes <= single_block_vmem_limit:
        # Keep the output last dim lane-dense (multiple of 128).
        Dp = _round_up(D, 128)
        emb_p = embeds if Dp == D else jnp.pad(embeds, ((0, 0), (0, Dp - D)))
        out = pl.pallas_call(
            _gcn_single_block_kernel,
            out_shape=jax.ShapeDtypeStruct((M, Dp), out_dtype),
            cost_estimate=cost,
        )(adj, emb_p)
        return out if Dp == D else out[:, :D]

    # ---------------- Tiled path (large graphs) -------------------------------
    # Feature tile: full (padded) feature width when it fits, so every adj tile
    # is streamed exactly once; otherwise cap it to keep VMEM usage modest
    # (fits comfortably inside v7x's 32 MiB scoped default).
    Dp = _round_up(D, 128)
    tn = Dp if Dp <= max_tn else max_tn
    Dp = _round_up(Dp, tn)

    tk_eff = min(tk, _round_up(K, 128))   # multiple of 128 (adj lane dim)
    Kp = _round_up(K, tk_eff)
    Mp = _round_up(M, tm)

    adj_p = adj
    if Mp != M or Kp != K:
        adj_p = jnp.pad(adj, ((0, Mp - M), (0, Kp - K)))
    emb_p = embeds
    if Kp != K or Dp != D:
        emb_p = jnp.pad(embeds, ((0, Kp - K), (0, Dp - D)))

    ni, nj, nk = Mp // tm, Dp // tn, Kp // tk_eff

    if nk == 1:
        # Single K step: no accumulator, no reduction grid axis.
        out = pl.pallas_call(
            _gcn_tiled_single_k_kernel,
            out_shape=jax.ShapeDtypeStruct((Mp, Dp), out_dtype),
            grid_spec=pltpu.PrefetchScalarGridSpec(
                num_scalar_prefetch=0,
                grid=(ni, nj),
                in_specs=[
                    pl.BlockSpec((tm, Kp), lambda i, j: (i, 0)),
                    pl.BlockSpec((Kp, tn), lambda i, j: (0, j)),
                ],
                out_specs=pl.BlockSpec((tm, tn), lambda i, j: (i, j)),
            ),
            compiler_params=pltpu.CompilerParams(
                dimension_semantics=("parallel", "parallel")
            ),
            cost_estimate=cost,
        )(adj_p, emb_p)
    else:
        out = pl.pallas_call(
            _gcn_tiled_acc_kernel,
            out_shape=jax.ShapeDtypeStruct((Mp, Dp), out_dtype),
            grid_spec=pltpu.PrefetchScalarGridSpec(
                num_scalar_prefetch=0,
                grid=(ni, nj, nk),
                in_specs=[
                    pl.BlockSpec((tm, tk_eff), lambda i, j, k: (i, k)),
                    pl.BlockSpec((tk_eff, tn), lambda i, j, k: (k, j)),
                ],
                out_specs=pl.BlockSpec((tm, tn), lambda i, j, k: (i, j)),
                scratch_shapes=[pltpu.VMEM((tm, tn), jnp.float32)],
            ),
            compiler_params=pltpu.CompilerParams(
                dimension_semantics=("parallel", "parallel", "arbitrary")
            ),
            cost_estimate=cost,
        )(adj_p, emb_p)

    if Mp != M or Dp != D:
        out = out[:M, :D]
    return out


# -----------------------------------------------------------------------------
# Self-test
# -----------------------------------------------------------------------------

if __name__ == "__main__":
    key = jax.random.PRNGKey(0)
    k_adj, k_emb = jax.random.split(key)

    num_nodes = 256  # N
    feat_dim = 128   # D

    # Deterministic synthetic inputs: sparse-ish row-normalized adjacency
    # (typical GCN input) and dense node embeddings.
    raw = jax.random.uniform(k_adj, (num_nodes, num_nodes), dtype=jnp.float32)
    adj = jnp.where(raw > 0.9, raw, 0.0)                    # ~10% density
    adj = adj + jnp.eye(num_nodes, dtype=jnp.float32)       # self loops
    adj = adj / jnp.sum(adj, axis=1, keepdims=True)         # row-normalize

    embeds = jax.random.normal(k_emb, (num_nodes, feat_dim), dtype=jnp.float32)

    # Fast grid-free single-block path (the shipped problem size).
    out = jax.block_until_ready(gcn_layer(adj, embeds))
    ref = adj @ embeds
    assert out.shape == (num_nodes, feat_dim)
    assert jnp.allclose(out, ref, atol=1e-4, rtol=1e-4)

    # Also exercise the padded / tiled path with awkward (non-multiple-of-128)
    # shapes by forcing the tiled branch.
    n2, d2 = 300, 200
    adj2 = jax.random.uniform(jax.random.PRNGKey(1), (n2, n2), dtype=jnp.float32)
    emb2 = jax.random.normal(jax.random.PRNGKey(2), (n2, d2), dtype=jnp.float32)
    out2 = jax.block_until_ready(
        gcn_layer(adj2, emb2, single_block_vmem_limit=0)
    )
    assert out2.shape == (n2, d2)
    assert jnp.allclose(out2, adj2 @ emb2, atol=1e-2, rtol=1e-2)

    print("KERNEL_OK")
</pallas_src>

<mosaic_0001>
module attributes {stable_mosaic.version = 11 : i64} {
  func.func @_gcn_single_block_kernel(%arg0: memref<256x256xf32, #tpu.memory_space<vmem>>, %arg1: memref<256x128xf32, #tpu.memory_space<vmem>>, %arg2: memref<256x128xf32, #tpu.memory_space<vmem>>) attributes {dimension_semantics = [], scalar_prefetch = 0 : i64, scratch_operands = 0 : i64, tpu.core_type = #tpu.core_type<tc>} {
    %c0 = arith.constant 0 : index
    %c0_0 = arith.constant 0 : index
    %0 = vector.load %arg0[%c0, %c0_0] : memref<256x256xf32, #tpu.memory_space<vmem>>, vector<256x256xf32>
    %c0_1 = arith.constant 0 : index
    %c0_2 = arith.constant 0 : index
    %1 = vector.load %arg1[%c0_1, %c0_2] : memref<256x128xf32, #tpu.memory_space<vmem>>, vector<256x128xf32>
    %cst = arith.constant dense<0.000000e+00> : vector<256x128xf32>
    %2 = tpu.matmul %0, %1, %cst {dimension_numbers = #tpu.dot_dimension_numbers<[1], [0], [0], [1], [0, 0, 1, 1], [], []>} : vector<256x256xf32>, vector<256x128xf32>, vector<256x128xf32> -> vector<256x128xf32>
    %c0_3 = arith.constant 0 : index
    %c0_4 = arith.constant 0 : index
    %3 = vector.load %arg2[%c0_3, %c0_4] : memref<256x128xf32, #tpu.memory_space<vmem>>, vector<256x128xf32>
    tpu.vector_store %arg2[%c0_3, %c0_4], %2 {strides = array<i32>} : memref<256x128xf32, #tpu.memory_space<vmem>>, vector<256x128xf32>,
    return
  }
}

</mosaic_0001>

<llo_original>
// kernel: tpu_custom_call.1
$region0: #{tpu_custom_call.1}
  #allocation0 [shape = 'u32[]', space=smem, size = 0x4, offset = 0x4, fixed_abs, tag = 'smem constant byte address 0x4 - core index']
  #allocation1 [shape = 'u32[144,128]{1,0:T(1,128)}', space=vmem, size = 0x12000, scoped, tag = 'internal scratch']
  %s0 = inlined_call_operand.hbm [shape: f32[256,256], index: 0, kind: input, shape index: {}]
  %s1 = inlined_call_operand.hbm [shape: f32[256,128], index: 1, kind: input, shape index: {}]
  %s2 = inlined_call_operand.hbm [shape: f32[256,128], index: 2, kind: output, shape index: {}]
  %s3 = sld [smem:[#allocation0]]
  $region26: #{tpu_custom_call.1} parent=0
    _
  %s5 = ssub.s32 1, %s3
  %s6 = scalar_select 0, %s5, %s3
  $region1: #{tpu_custom_call.1} parent=0
    #allocation2 [shape = 'u8[262144]{0}', space=vmem, size = 0x40000, scoped, tag = 'input window, operand 0, single buffered']
    #allocation3 [shape = 's32[1]{0}', space=sflag, size = 0x4, scoped, tag = 'scoped memory for tpu_custom_call.1']
    #allocation4 [shape = 's32[1]{0}', space=sflag, size = 0x4, scoped, tag = 'scoped memory for tpu_custom_call.1']
    #allocation5 [shape = 'u8[131072]{0}', space=vmem, size = 0x20000, scoped, tag = 'input window, operand 1, single buffered']
    #allocation6 [shape = 's32[1]{0}', space=sflag, size = 0x4, scoped, tag = 'scoped memory for tpu_custom_call.1']
    #allocation7 [shape = 'u8[131072]{0}', space=vmem, size = 0x20000, scoped, tag = 'output window, operand 0, single buffered']
    %7 = vsyncpa [#allocation3], 0
    %8 = vsyncpa [#allocation6], 0
    %9 = vsyncpa [#allocation4], 0
    // Predicated region
    $region2: #{tpu_custom_call.1} parent=1 // pred_check
      _
    $region3: #{tpu_custom_call.1} parent=1 // pred_check_branch
      %11 = sbr.rel (0) target = $region5
    $region4: #{tpu_custom_call.1} parent=1 // pred_region
      %s13 = ssub.s32 8192, 8192
      %14 = vsyncadd [#allocation3], %s13
      %s15 = sshll.u32 [#allocation2], 4
      %s16 = int_to_ptr.vmem [resolvable:$true] %s15
      %21 = dma.hbm_to_vmem [thread:$0]  %s0, 8192, %s16, [#allocation3], 256, 256, 16
    $region5: #{tpu_custom_call.1} parent=1 // pred_fallthru
      _
    // Predicated region
    $region6: #{tpu_custom_call.1} parent=1 // pred_check
      _
    $region7: #{tpu_custom_call.1} parent=1 // pred_check_branch
      %23 = sbr.rel (0) target = $region9
    $region8: #{tpu_custom_call.1} parent=1 // pred_region
      %s25 = ssub.s32 4096, 4096
      %26 = vsyncadd [#allocation6], %s25
      %s27 = sshll.u32 [#allocation5], 4
      %s28 = int_to_ptr.vmem [resolvable:$true] %s27
      %33 = dma.hbm_to_vmem [thread:$0]  %s1, 4096, %s28, [#allocation6], 128, 128, 8
    $region9: #{tpu_custom_call.1} parent=1 // pred_fallthru
      _
    // Predicated region
    $region10: #{tpu_custom_call.1} parent=1 // pred_check
      _
    $region11: #{tpu_custom_call.1} parent=1 // pred_check_branch
      %35 = sbr.rel (0) target = $region13
    $region12: #{tpu_custom_call.1} parent=1 // pred_region
      %36 = dma.done [#allocation3], 8192
    $region13: #{tpu_custom_call.1} parent=1 // pred_fallthru
      _
    // Predicated region
    $region14: #{tpu_custom_call.1} parent=1 // pred_check
      _
    $region15: #{tpu_custom_call.1} parent=1 // pred_check_branch
      %38 = sbr.rel (0) target = $region17
    $region16: #{tpu_custom_call.1} parent=1 // pred_region
      %39 = dma.done [#allocation6], 4096
    $region17: #{tpu_custom_call.1} parent=1 // pred_fallthru
      _
    %v40 = vld [vmem:[#allocation2] sm:$0xff]
    %v41 = vld [vmem:[#allocation2 + $0x8] sm:$0xff]
    %v42 = vld [vmem:[#allocation2 + $0x10] sm:$0xff]
    %v43 = vld [vmem:[#allocation2 + $0x18] sm:$0xff]
    %v44 = vld [vmem:[#allocation2 + $0x20] sm:$0xff]
    %v45 = vld [vmem:[#allocation2 + $0x28] sm:$0xff]
    %v46 = vld [vmem:[#allocation2 + $0x30] sm:$0xff]
    %v47 = vld [vmem:[#allocation2 + $0x38] sm:$0xff]
    %v48 = vld [vmem:[#allocation2 + $0x40] sm:$0xff]
    %v49 = vld [vmem:[#allocation2 + $0x48] sm:$0xff]
    %v50 = vld [vmem:[#allocation2 + $0x50] sm:$0xff]
    %v51 = vld [vmem:[#allocation2 + $0x58] sm:$0xff]
    %v52 = vld [vmem:[#allocation2 + $0x60] sm:$0xff]
    %v53 = vld [vmem:[#allocation2 + $0x68] sm:$0xff]
    %v54 = vld [vmem:[#allocation2 + $0x70] sm:$0xff]
    %v55 = vld [vmem:[#allocation2 + $0x78] sm:$0xff]
    %v56 = vld [vmem:[#allocation2 + $0x80] sm:$0xff]
    %v57 = vld [vmem:[#allocation2 + $0x88] sm:$0xff]
    %v58 = vld [vmem:[#allocation2 + $0x90] sm:$0xff]
    %v59 = vld [vmem:[#allocation2 + $0x98] sm:$0xff]
    %v60 = vld [vmem:[#allocation2 + $0xa0] sm:$0xff]
    %v61 = vld [vmem:[#allocation2 + $0xa8] sm:$0xff]
    %v62 = vld [vmem:[#allocation2 + $0xb0] sm:$0xff]
    %v63 = vld [vmem:[#allocation2 + $0xb8] sm:$0xff]
    %v64 = vld [vmem:[#allocation2 + $0xc0] sm:$0xff]
    %v65 = vld [vmem:[#allocation2 + $0xc8] sm:$0xff]
    %v66 = vld [vmem:[#allocation2 + $0xd0] sm:$0xff]
    %v67 = vld [vmem:[#allocation2 + $0xd8] sm:$0xff]
    %v68 = vld [vmem:[#allocation2 + $0xe0] sm:$0xff]
    %v69 = vld [vmem:[#allocation2 + $0xe8] sm:$0xff]
    %v70 = vld [vmem:[#allocation2 + $0xf0] sm:$0xff]
    %v71 = vld [vmem:[#allocation2 + $0xf8] sm:$0xff]
    %v72 = vld [vmem:[#allocation2 + $0x100] sm:$0xff]
    %v73 = vld [vmem:[#allocation2 + $0x108] sm:$0xff]
    %v74 = vld [vmem:[#allocation2 + $0x110] sm:$0xff]
    %v75 = vld [vmem:[#allocation2 + $0x118] sm:$0xff]
    %v76 = vld [vmem:[#allocation2 + $0x120] sm:$0xff]
    %v77 = vld [vmem:[#allocation2 + $0x128] sm:$0xff]
    %v78 = vld [vmem:[#allocation2 + $0x130] sm:$0xff]
    %v79 = vld [vmem:[#allocation2 + $0x138] sm:$0xff]
    %v80 = vld [vmem:[#allocation2 + $0x140] sm:$0xff]
    %v81 = vld [vmem:[#allocation2 + $0x148] sm:$0xff]
    %v82 = vld [vmem:[#allocation2 + $0x150] sm:$0xff]
    %v83 = vld [vmem:[#allocation2 + $0x158] sm:$0xff]
    %v84 = vld [vmem:[#allocation2 + $0x160] sm:$0xff]
    %v85 = vld [vmem:[#allocation2 + $0x168] sm:$0xff]
    %v86 = vld [vmem:[#allocation2 + $0x170] sm:$0xff]
    %v87 = vld [vmem:[#allocation2 + $0x178] sm:$0xff]
    %v88 = vld [vmem:[#allocation2 + $0x180] sm:$0xff]
    %v89 = vld [vmem:[#allocation2 + $0x188] sm:$0xff]
    %v90 = vld [vmem:[#allocation2 + $0x190] sm:$0xff]
    %v91 = vld [vmem:[#allocation2 + $0x198] sm:$0xff]
    %v92 = vld [vmem:[#allocation2 + $0x1a0] sm:$0xff]
    %v93 = vld [vmem:[#allocation2 + $0x1a8] sm:$0xff]
    %v94 = vld [vmem:[#allocation2 + $0x1b0] sm:$0xff]
    %v95 = vld [vmem:[#allocation2 + $0x1b8] sm:$0xff]
    %v96 = vld [vmem:[#allocation2 + $0x1c0] sm:$0xff]
    %v97 = vld [vmem:[#allocation2 + $0x1c8] sm:$0xff]
    %v98 = vld [vmem:[#allocation2 + $0x1d0] sm:$0xff]
    %v99 = vld [vmem:[#allocation2 + $0x1d8] sm:$0xff]
    %v100 = vld [vmem:[#allocation2 + $0x1e0] sm:$0xff]
    %v101 = vld [vmem:[#allocation2 + $0x1e8] sm:$0xff]
    %v102 = vld [vmem:[#allocation2 + $0x1f0] sm:$0xff]
    %v103 = vld [vmem:[#allocation2 + $0x1f8] sm:$0xff]
    %v104 = vld [vmem:[#allocation5] sm:$0xff]
    %v105 = vld [vmem:[#allocation5 + $0x8] sm:$0xff]
    %v106 = vld [vmem:[#allocation5 + $0x10] sm:$0xff]
    %v107 = vld [vmem:[#allocation5 + $0x18] sm:$0xff]
    %v108 = vld [vmem:[#allocation5 + $0x20] sm:$0xff]
    %v109 = vld [vmem:[#allocation5 + $0x28] sm:$0xff]
    %v110 = vld [vmem:[#allocation5 + $0x30] sm:$0xff]
    %v111 = vld [vmem:[#allocation5 + $0x38] sm:$0xff]
    %v112 = vld [vmem:[#allocation5 + $0x40] sm:$0xff]
    %v113 = vld [vmem:[#allocation5 + $0x48] sm:$0xff]
    %v114 = vld [vmem:[#allocation5 + $0x50] sm:$0xff]
    %v115 = vld [vmem:[#allocation5 + $0x58] sm:$0xff]
    %v116 = vld [vmem:[#allocation5 + $0x60] sm:$0xff]
    %v117 = vld [vmem:[#allocation5 + $0x68] sm:$0xff]
    %v118 = vld [vmem:[#allocation5 + $0x70] sm:$0xff]
    %v119 = vld [vmem:[#allocation5 + $0x78] sm:$0xff]
    %v120 = vld [vmem:[#allocation5 + $0x80] sm:$0xff]
    %v121 = vld [vmem:[#allocation5 + $0x88] sm:$0xff]
    %v122 = vld [vmem:[#allocation5 + $0x90] sm:$0xff]
    %v123 = vld [vmem:[#allocation5 + $0x98] sm:$0xff]
    %v124 = vld [vmem:[#allocation5 + $0xa0] sm:$0xff]
    %v125 = vld [vmem:[#allocation5 + $0xa8] sm:$0xff]
    %v126 = vld [vmem:[#allocation5 + $0xb0] sm:$0xff]
    %v127 = vld [vmem:[#allocation5 + $0xb8] sm:$0xff]
    %v128 = vld [vmem:[#allocation5 + $0xc0] sm:$0xff]
    %v129 = vld [vmem:[#allocation5 + $0xc8] sm:$0xff]
    %v130 = vld [vmem:[#allocation5 + $0xd0] sm:$0xff]
    %v131 = vld [vmem:[#allocation5 + $0xd8] sm:$0xff]
    %v132 = vld [vmem:[#allocation5 + $0xe0] sm:$0xff]
    %v133 = vld [vmem:[#allocation5 + $0xe8] sm:$0xff]
    %v134 = vld [vmem:[#allocation5 + $0xf0] sm:$0xff]
    %v135 = vld [vmem:[#allocation5 + $0xf8] sm:$0xff]
    %136 = vmatprep.subr.mxu0 0.0
    %137 = vmatpush1.msra.mxu0 %v119
    %138 = vmatprep.subr.mxu0 0.0
    %139 = vmatpush1.msra.mxu0 %v118
    %140 = vmatprep.subr.mxu0 0.0
    %141 = vmatpush1.msra.mxu0 %v117
    %142 = vmatprep.subr.mxu0 0.0
    %143 = vmatpush1.msra.mxu0 %v116
    %144 = vmatprep.subr.mxu0 0.0
    %145 = vmatpush1.msra.mxu0 %v115
    %146 = vmatprep.subr.mxu0 0.0
    %147 = vmatpush1.msra.mxu0 %v114
    %148 = vmatprep.subr.mxu0 0.0
    %149 = vmatpush1.msra.mxu0 %v113
    %150 = vmatprep.subr.mxu0 0.0
    %151 = vmatpush1.msra.mxu0 %v112
    %152 = vmatprep.subr.mxu0 0.0
    %153 = vmatpush1.msra.mxu0 %v111
    %154 = vmatprep.subr.mxu0 0.0
    %155 = vmatpush1.msra.mxu0 %v110
    %156 = vmatprep.subr.mxu0 0.0
    %157 = vmatpush1.msra.mxu0 %v109
    %158 = vmatprep.subr.mxu0 0.0
    %159 = vmatpush1.msra.mxu0 %v108
    %160 = vmatprep.subr.mxu0 0.0
    %161 = vmatpush1.msra.mxu0 %v107
    %162 = vmatprep.subr.mxu0 0.0
    %163 = vmatpush1.msra.mxu0 %v106
    %164 = vmatprep.subr.mxu0 0.0
    %165 = vmatpush1.msra.mxu0 %v105
    %166 = vmatprep.subr.mxu0 0.0
    %167 = vmatpush1.msra.mxu0 %v104
    %168 = vmatprep.subr.mxu0 0.0
    %169 = vmatpush2.msra.mxu0 %v135
    %170 = vmatprep.subr.mxu0 0.0
    %171 = vmatpush2.msra.mxu0 %v134
    %172 = vmatprep.subr.mxu0 0.0
    %173 = vmatpush2.msra.mxu0 %v133
    %174 = vmatprep.subr.mxu0 0.0
    %175 = vmatpush2.msra.mxu0 %v132
    %176 = vmatprep.subr.mxu0 0.0
    %177 = vmatpush2.msra.mxu0 %v131
    %178 = vmatprep.subr.mxu0 0.0
    %179 = vmatpush2.msra.mxu0 %v130
    %180 = vmatprep.subr.mxu0 0.0
    %181 = vmatpush2.msra.mxu0 %v129
    %182 = vmatprep.subr.mxu0 0.0
    %183 = vmatpush2.msra.mxu0 %v128
    %184 = vmatprep.subr.mxu0 0.0
    %185 = vmatpush2.msra.mxu0 %v127
    %186 = vmatprep.subr.mxu0 0.0
    %187 = vmatpush2.msra.mxu0 %v126
    %188 = vmatprep.subr.mxu0 0.0
    %189 = vmatpush2.msra.mxu0 %v125
    %190 = vmatprep.subr.mxu0 0.0
    %191 = vmatpush2.msra.mxu0 %v124
    %192 = vmatprep.subr.mxu0 0.0
    %193 = vmatpush2.msra.mxu0 %v123
    %194 = vmatprep.subr.mxu0 0.0
    %195 = vmatpush2.msra.mxu0 %v122
    %196 = vmatprep.subr.mxu0 0.0
    %197 = vmatpush2.msra.mxu0 %v121
    %198 = vmatprep.subr.mxu0 0.0
    %199 = vmatpush2.msra.mxu0 %v120
    %200 = vmatprep.mubr.f32.mxu0 %v41
    %201 = vmatmul.mubr.f32.gmra.mxu0 %v40
    %v202 = vpop.f32.mrf.mxu0
    %v203 = vadd.f32 0.0, %v202
    %v204 = vpop.f32.mrf.mxu0
    %205 = vmatprep.mubr.f32.mxu0 %v43
    %206 = vmatmul.mubr.f32.gmra.mxu0 %v42
    %v207 = vpop.f32.mrf.mxu0
    %v208 = vadd.f32 0.0, %v207
    %v209 = vpop.f32.mrf.mxu0
    %210 = vmatprep.mubr.f32.mxu0 %v45
    %211 = vmatmul.mubr.f32.gmra.mxu0 %v44
    %v212 = vpop.f32.mrf.mxu0
    %v213 = vadd.f32 0.0, %v212
    %v214 = vpop.f32.mrf.mxu0
    %215 = vmatprep.mubr.f32.mxu0 %v47
    %216 = vmatmul.mubr.f32.gmra.mxu0 %v46
    %v217 = vpop.f32.mrf.mxu0
    %v218 = vadd.f32 0.0, %v217
    %v219 = vpop.f32.mrf.mxu0
    %220 = vmatprep.mubr.f32.mxu0 %v49
    %221 = vmatmul.mubr.f32.gmra.mxu0 %v48
    %v222 = vpop.f32.mrf.mxu0
    %v223 = vadd.f32 0.0, %v222
    %v224 = vpop.f32.mrf.mxu0
    %225 = vmatprep.mubr.f32.mxu0 %v51
    %226 = vmatmul.mubr.f32.gmra.mxu0 %v50
    %v227 = vpop.f32.mrf.mxu0
    %v228 = vadd.f32 0.0, %v227
    %v229 = vpop.f32.mrf.mxu0
    %230 = vmatprep.mubr.f32.mxu0 %v53
    %231 = vmatmul.mubr.f32.gmra.mxu0 %v52
    %v232 = vpop.f32.mrf.mxu0
    %v233 = vadd.f32 0.0, %v232
    %v234 = vpop.f32.mrf.mxu0
    %235 = vmatprep.mubr.f32.mxu0 %v55
    %236 = vmatmul.mubr.f32.gmra.mxu0 %v54
    %v237 = vpop.f32.mrf.mxu0
    %v238 = vadd.f32 0.0, %v237
    %v239 = vpop.f32.mrf.mxu0
    %240 = vmatprep.mubr.f32.mxu0 %v57
    %241 = vmatmul.mubr.f32.gmra.mxu0 %v56
    %v242 = vpop.f32.mrf.mxu0
    %v243 = vadd.f32 0.0, %v242
    %v244 = vpop.f32.mrf.mxu0
    %245 = vmatprep.mubr.f32.mxu0 %v59
    %246 = vmatmul.mubr.f32.gmra.mxu0 %v58
    %v247 = vpop.f32.mrf.mxu0
    %v248 = vadd.f32 0.0, %v247
    %v249 = vpop.f32.mrf.mxu0
    %250 = vmatprep.mubr.f32.mxu0 %v61
    %251 = vmatmul.mubr.f32.gmra.mxu0 %v60
    %v252 = vpop.f32.mrf.mxu0
    %v253 = vadd.f32 0.0, %v252
    %v254 = vpop.f32.mrf.mxu0
    %255 = vmatprep.mubr.f32.mxu0 %v63
    %256 = vmatmul.mubr.f32.gmra.mxu0 %v62
    %v257 = vpop.f32.mrf.mxu0
    %v258 = vadd.f32 0.0, %v257
    %v259 = vpop.f32.mrf.mxu0
    %260 = vmatprep.mubr.f32.mxu0 %v65
    %261 = vmatmul.mubr.f32.gmra.mxu0 %v64
    %v262 = vpop.f32.mrf.mxu0
    %v263 = vadd.f32 0.0, %v262
    %v264 = vpop.f32.mrf.mxu0
    %265 = vmatprep.mubr.f32.mxu0 %v67
    %266 = vmatmul.mubr.f32.gmra.mxu0 %v66
    %v267 = vpop.f32.mrf.mxu0
    %v268 = vadd.f32 0.0, %v267
    %v269 = vpop.f32.mrf.mxu0
    %270 = vmatprep.mubr.f32.mxu0 %v69
    %271 = vmatmul.mubr.f32.gmra.mxu0 %v68
    %v272 = vpop.f32.mrf.mxu0
    %v273 = vadd.f32 0.0, %v272
    %v274 = vpop.f32.mrf.mxu0
    %275 = vmatprep.mubr.f32.mxu0 %v71
    %276 = vmatmul.mubr.f32.gmra.mxu0 %v70
    %v277 = vpop.f32.mrf.mxu0
    %v278 = vadd.f32 0.0, %v277
    %v279 = vpop.f32.mrf.mxu0
    %280 = vmatprep.mubr.f32.mxu0 %v73
    %281 = vmatmul.mubr.f32.gmra.mxu0 %v72
    %v282 = vpop.f32.mrf.mxu0
    %v283 = vadd.f32 0.0, %v282
    %v284 = vpop.f32.mrf.mxu0
    %285 = vmatprep.mubr.f32.mxu0 %v75
    %286 = vmatmul.mubr.f32.gmra.mxu0 %v74
    %v287 = vpop.f32.mrf.mxu0
    %v288 = vadd.f32 0.0, %v287
    %v289 = vpop.f32.mrf.mxu0
    %290 = vmatprep.mubr.f32.mxu0 %v77
    %291 = vmatmul.mubr.f32.gmra.mxu0 %v76
    %v292 = vpop.f32.mrf.mxu0
    %v293 = vadd.f32 0.0, %v292
    %v294 = vpop.f32.mrf.mxu0
    %295 = vmatprep.mubr.f32.mxu0 %v79
    %296 = vmatmul.mubr.f32.gmra.mxu0 %v78
    %v297 = vpop.f32.mrf.mxu0
    %v298 = vadd.f32 0.0, %v297
    %v299 = vpop.f32.mrf.mxu0
    %300 = vmatprep.mubr.f32.mxu0 %v81
    %301 = vmatmul.mubr.f32.gmra.mxu0 %v80
    %v302 = vpop.f32.mrf.mxu0
    %v303 = vadd.f32 0.0, %v302
    %v304 = vpop.f32.mrf.mxu0
    %305 = vmatprep.mubr.f32.mxu0 %v83
    %306 = vmatmul.mubr.f32.gmra.mxu0 %v82
    %v307 = vpop.f32.mrf.mxu0
    %v308 = vadd.f32 0.0, %v307
    %v309 = vpop.f32.mrf.mxu0
    %310 = vmatprep.mubr.f32.mxu0 %v85
    %311 = vmatmul.mubr.f32.gmra.mxu0 %v84
    %v312 = vpop.f32.mrf.mxu0
    %v313 = vadd.f32 0.0, %v312
    %v314 = vpop.f32.mrf.mxu0
    %315 = vmatprep.mubr.f32.mxu0 %v87
    %316 = vmatmul.mubr.f32.gmra.mxu0 %v86
    %v317 = vpop.f32.mrf.mxu0
    %v318 = vadd.f32 0.0, %v317
    %v319 = vpop.f32.mrf.mxu0
    %320 = vmatprep.mubr.f32.mxu0 %v89
    %321 = vmatmul.mubr.f32.gmra.mxu0 %v88
    %v322 = vpop.f32.mrf.mxu0
    %v323 = vadd.f32 0.0, %v322
    %v324 = vpop.f32.mrf.mxu0
    %325 = vmatprep.mubr.f32.mxu0 %v91
    %326 = vmatmul.mubr.f32.gmra.mxu0 %v90
    %v327 = vpop.f32.mrf.mxu0
    %v328 = vadd.f32 0.0, %v327
    %v329 = vpop.f32.mrf.mxu0
    %330 = vmatprep.mubr.f32.mxu0 %v93
    %331 = vmatmul.mubr.f32.gmra.mxu0 %v92
    %v332 = vpop.f32.mrf.mxu0
    %v333 = vadd.f32 0.0, %v332
    %v334 = vpop.f32.mrf.mxu0
    %335 = vmatprep.mubr.f32.mxu0 %v95
    %336 = vmatmul.mubr.f32.gmra.mxu0 %v94
    %v337 = vpop.f32.mrf.mxu0
    %v338 = vadd.f32 0.0, %v337
    %v339 = vpop.f32.mrf.mxu0
    %340 = vmatprep.mubr.f32.mxu0 %v97
    %341 = vmatmul.mubr.f32.gmra.mxu0 %v96
    %v342 = vpop.f32.mrf.mxu0
    %v343 = vadd.f32 0.0, %v342
    %v344 = vpop.f32.mrf.mxu0
    %345 = vmatprep.mubr.f32.mxu0 %v99
    %346 = vmatmul.mubr.f32.gmra.mxu0 %v98
    %v347 = vpop.f32.mrf.mxu0
    %v348 = vadd.f32 0.0, %v347
    %v349 = vpop.f32.mrf.mxu0
    %350 = vmatprep.mubr.f32.mxu0 %v101
    %351 = vmatmul.mubr.f32.gmra.mxu0 %v100
    %v352 = vpop.f32.mrf.mxu0
    %v353 = vadd.f32 0.0, %v352
    %v354 = vpop.f32.mrf.mxu0
    %355 = vmatprep.mubr.f32.mxu0 %v103
    %356 = vmatmul.mubr.f32.gmra.mxu0 %v102
    %v357 = vpop.f32.mrf.mxu0
    %v358 = vadd.f32 0.0, %v357
    %v359 = vpop.f32.mrf.mxu0
    %360 = vdwg.mxu0
    %361 = vst [vmem:[#allocation7] sm:$0xff] %v203
    %362 = vst [vmem:[#allocation7 + $0x8] sm:$0xff] %v208
    %363 = vst [vmem:[#allocation7 + $0x10] sm:$0xff] %v213
    %364 = vst [vmem:[#allocation7 + $0x18] sm:$0xff] %v218
    %365 = vst [vmem:[#allocation7 + $0x20] sm:$0xff] %v223
    %366 = vst [vmem:[#allocation7 + $0x28] sm:$0xff] %v228
    %367 = vst [vmem:[#allocation7 + $0x30] sm:$0xff] %v233
    %368 = vst [vmem:[#allocation7 + $0x38] sm:$0xff] %v238
    %369 = vst [vmem:[#allocation7 + $0x40] sm:$0xff] %v243
    %370 = vst [vmem:[#allocation7 + $0x48] sm:$0xff] %v248
    %371 = vst [vmem:[#allocation7 + $0x50] sm:$0xff] %v253
    %372 = vst [vmem:[#allocation7 + $0x58] sm:$0xff] %v258
    %373 = vst [vmem:[#allocation7 + $0x60] sm:$0xff] %v263
    %374 = vst [vmem:[#allocation7 + $0x68] sm:$0xff] %v268
    %375 = vst [vmem:[#allocation7 + $0x70] sm:$0xff] %v273
    %376 = vst [vmem:[#allocation7 + $0x78] sm:$0xff] %v278
    %377 = vst [vmem:[#allocation7 + $0x80] sm:$0xff] %v283
    %378 = vst [vmem:[#allocation7 + $0x88] sm:$0xff] %v288
    %379 = vst [vmem:[#allocation7 + $0x90] sm:$0xff] %v293
    %380 = vst [vmem:[#allocation7 + $0x98] sm:$0xff] %v298
    %381 = vst [vmem:[#allocation7 + $0xa0] sm:$0xff] %v303
    %382 = vst [vmem:[#allocation7 + $0xa8] sm:$0xff] %v308
    %383 = vst [vmem:[#allocation7 + $0xb0] sm:$0xff] %v313
    %384 = vst [vmem:[#allocation7 + $0xb8] sm:$0xff] %v318
    %385 = vst [vmem:[#allocation7 + $0xc0] sm:$0xff] %v323
    %386 = vst [vmem:[#allocation7 + $0xc8] sm:$0xff] %v328
    %387 = vst [vmem:[#allocation7 + $0xd0] sm:$0xff] %v333
    %388 = vst [vmem:[#allocation7 + $0xd8] sm:$0xff] %v338
    %389 = vst [vmem:[#allocation7 + $0xe0] sm:$0xff] %v343
    %390 = vst [vmem:[#allocation7 + $0xe8] sm:$0xff] %v348
    %391 = vst [vmem:[#allocation7 + $0xf0] sm:$0xff] %v353
    %392 = vst [vmem:[#allocation7 + $0xf8] sm:$0xff] %v358
    // Predicated region
    $region18: #{tpu_custom_call.1} parent=1 // pred_check
      _
    $region19: #{tpu_custom_call.1} parent=1 // pred_check_branch
      %394 = sbr.rel (0) target = $region21
    $region20: #{tpu_custom_call.1} parent=1 // pred_region
      %s396 = ssub.s32 4096, 4096
      %397 = vsyncadd [#allocation4], %s396
      %s398 = sshll.u32 [#allocation7], 4
      %s399 = int_to_ptr.vmem [resolvable:$true] %s398
      %404 = dma.vmem_to_hbm [thread:$0]  %s399, 4096, %s2, [#allocation4], 128, 128, 8
    $region21: #{tpu_custom_call.1} parent=1 // pred_fallthru
      _
    // Predicated region
    $region22: #{tpu_custom_call.1} parent=1 // pred_check
      _
    $region23: #{tpu_custom_call.1} parent=1 // pred_check_branch
      %406 = sbr.rel (0) target = $region25
    $region24: #{tpu_custom_call.1} parent=1 // pred_region
      %407 = dma.done [#allocation4], 4096
    $region25: #{tpu_custom_call.1} parent=1 // pred_fallthru
      _
    %408 = vsyncpa [#allocation3], 1
    %409 = vsyncpa [#allocation6], 1
    %410 = vsyncpa [#allocation4], 1

</llo_original>
